<compile_context>
chip_gen: v6e
topology: v6e:2x2x1
jax: 0.10.0
libtpu: 0.0.40
codegen_flags: <defaults>
</compile_context>

<pallas_src>
import jax
import jax.numpy as jnp
from jax.experimental import pallas as pl
from jax.experimental.pallas import tpu as pltpu

IN_FEATURES = 20
OUT_FEATURES = 1   # kernel hard-assumes out_features == 1 (asserted below)


def _linear_kernel(x_ref, p_ref, o_ref):
    x = x_ref[...]                                   # (B, K) f32, VMEM
    p = p_ref[...]                                   # (1, K+1) f32, VMEM
    w = p[:, :IN_FEATURES]                           # (1, K)  weight (PyTorch layout)
    b = p[:, IN_FEATURES:IN_FEATURES + 1]            # (1, 1)  bias (stays vector-side)
    # VPU elementwise multiply + XLU lane reduction; no MXU round trip.
    o_ref[...] = jnp.sum(x * w, axis=1, keepdims=True) + b


def pack_params(weight, bias):
    """One-time, init-side packing: (1, K) weight + (1,) bias -> (1, K+1) f32 slab."""
    assert weight.shape == (OUT_FEATURES, IN_FEATURES)
    assert bias.shape == (OUT_FEATURES,)
    return jnp.concatenate(
        [weight, bias.reshape(OUT_FEATURES, 1)], axis=1
    ).astype(jnp.float32)


def stage2_forward(x, params):
    """x: (B, 20) f32; params: (1, 21) f32 packed slab from pack_params()."""
    B, K = x.shape
    assert K == IN_FEATURES
    assert params.shape == (OUT_FEATURES, IN_FEATURES + 1)
    cost = pl.CostEstimate(
        flops=2 * B * K,
        transcendentals=0,
        bytes_accessed=(B * K + (K + 1) + B) * 4,
    )
    return pl.pallas_call(
        _linear_kernel,
        out_shape=jax.ShapeDtypeStruct((B, OUT_FEATURES), jnp.float32),
        in_specs=[
            pl.BlockSpec(memory_space=pltpu.MemorySpace.VMEM),   # x, whole array
            pl.BlockSpec(memory_space=pltpu.MemorySpace.VMEM),   # packed weight+bias
        ],
        out_specs=pl.BlockSpec(memory_space=pltpu.MemorySpace.VMEM),
        cost_estimate=cost,
    )(x, params)


if __name__ == "__main__":
    key = jax.random.PRNGKey(0)
    kx, kw, kb = jax.random.split(key, 3)

    B = 8
    x = jax.random.normal(kx, (B, IN_FEATURES), dtype=jnp.float32)

    # Deterministic parameter init mimicking nn.Linear's uniform(-1/sqrt(in), 1/sqrt(in)).
    bound = 1.0 / (IN_FEATURES ** 0.5)
    weight = jax.random.uniform(kw, (OUT_FEATURES, IN_FEATURES), dtype=jnp.float32,
                                minval=-bound, maxval=bound)
    bias = jax.random.uniform(kb, (OUT_FEATURES,), dtype=jnp.float32,
                              minval=-bound, maxval=bound)

    params = pack_params(weight, bias)   # one-time init-side packing

    y = stage2_forward(x, params)
    jax.block_until_ready(y)

    # Correctness check against plain JAX reference.
    y_ref = x @ weight.T + bias
    assert y.shape == (B, OUT_FEATURES)
    assert jnp.allclose(y, y_ref, atol=1e-5, rtol=1e-5)

    print("KERNEL_OK")
</pallas_src>

<mosaic_0001>
module attributes {stable_mosaic.version = 11 : i64} {
  func.func @_linear_kernel(%arg0: memref<8x20xf32, #tpu.memory_space<vmem>>, %arg1: memref<1x21xf32, #tpu.memory_space<vmem>>, %arg2: memref<8x1xf32, #tpu.memory_space<vmem>>) attributes {dimension_semantics = [], scalar_prefetch = 0 : i64, scratch_operands = 0 : i64, tpu.core_type = #tpu.core_type<tc>} {
    %c0 = arith.constant 0 : index
    %c0_0 = arith.constant 0 : index
    %0 = vector.load %arg0[%c0, %c0_0] : memref<8x20xf32, #tpu.memory_space<vmem>>, vector<8x20xf32>
    %c0_1 = arith.constant 0 : index
    %c0_2 = arith.constant 0 : index
    %1 = vector.load %arg1[%c0_1, %c0_2] : memref<1x21xf32, #tpu.memory_space<vmem>>, vector<1x21xf32>
    %2 = vector.extract_strided_slice %1 {offsets = [0, 0], sizes = [1, 20], strides = [1, 1]} : vector<1x21xf32> to vector<1x20xf32>
    %3 = vector.extract_strided_slice %1 {offsets = [0, 20], sizes = [1, 1], strides = [1, 1]} : vector<1x21xf32> to vector<1x1xf32>
    %4 = vector.broadcast %2 : vector<1x20xf32> to vector<8x20xf32>
    %5 = arith.mulf %0, %4 : vector<8x20xf32>
    %cst = arith.constant dense<0.000000e+00> : vector<8xf32>
    %6 = vector.multi_reduction <add>, %5, %cst [1] : vector<8x20xf32> to vector<8xf32>
    %7 = vector.shape_cast %6 : vector<8xf32> to vector<8x1xf32>
    %8 = vector.broadcast %3 : vector<1x1xf32> to vector<8x1xf32>
    %9 = arith.addf %7, %8 : vector<8x1xf32>
    %c0_3 = arith.constant 0 : index
    %c0_4 = arith.constant 0 : index
    %10 = vector.load %arg2[%c0_3, %c0_4] : memref<8x1xf32, #tpu.memory_space<vmem>>, vector<8x1xf32>
    tpu.vector_store %arg2[%c0_3, %c0_4], %9 {strides = array<i32>} : memref<8x1xf32, #tpu.memory_space<vmem>>, vector<8x1xf32>,
    return
  }
}

</mosaic_0001>

<llo_original>
// kernel: tpu_custom_call.1
$region0: #{tpu_custom_call.1}
  #allocation0 [shape = 'u32[]', space=smem, size = 0x4, offset = 0x4, fixed_abs, tag = 'smem constant byte address 0x4 - core index']
  #allocation1 [shape = 'u32[144,128]{1,0:T(1,128)}', space=vmem, size = 0x12000, scoped, tag = 'internal scratch']
  %s0 = inlined_call_operand.hbm [shape: f32[8,20], index: 0, kind: input, shape index: {}]
  %s1 = inlined_call_operand.vmem [shape: f32[1,21], index: 1, kind: input, shape index: {}]
  %s2 = inlined_call_operand.vmem [shape: f32[8,1], index: 2, kind: output, shape index: {}]
  %s3 = sld [smem:[#allocation0]]
  $region22: #{tpu_custom_call.1} parent=0
    _
  %s5 = ssub.s32 1, %s3
  %s6 = scalar_select 0, %s5, %s3
  $region1: #{tpu_custom_call.1} parent=0
    #allocation2 [shape = 'u8[4096]{0}', space=vmem, size = 0x1000, scoped, tag = 'input window, operand 0, single buffered']
    #allocation3 [shape = 's32[1]{0}', space=sflag, size = 0x4, scoped, tag = 'scoped memory for tpu_custom_call.1']
    %7 = vsyncpa [#allocation3], 0
    // Predicated region
    $region2: #{tpu_custom_call.1} parent=1 // pred_check
      _
    $region3: #{tpu_custom_call.1} parent=1 // pred_check_branch
      %9 = sbr.rel (0) target = $region5
    $region4: #{tpu_custom_call.1} parent=1 // pred_region
      %s11 = ssub.s32 128, 128
      %12 = vsyncadd [#allocation3], %s11
      %s14 = sshll.u32 [#allocation2], 4
      %s15 = int_to_ptr.vmem [resolvable:$true] %s14
      %17 = dma.hbm_to_vmem [thread:$0]  %s0, 128, %s15, [#allocation3]
    $region5: #{tpu_custom_call.1} parent=1 // pred_fallthru
      _
    // Predicated region
    $region6: #{tpu_custom_call.1} parent=1 // pred_check
      _
    $region7: #{tpu_custom_call.1} parent=1 // pred_check_branch
      %19 = sbr.rel (0) target = $region9
    $region8: #{tpu_custom_call.1} parent=1 // pred_region
      _
    $region9: #{tpu_custom_call.1} parent=1 // pred_fallthru
      _
    // Predicated region
    $region10: #{tpu_custom_call.1} parent=1 // pred_check
      _
    $region11: #{tpu_custom_call.1} parent=1 // pred_check_branch
      %21 = sbr.rel (0) target = $region13
    $region12: #{tpu_custom_call.1} parent=1 // pred_region
      %22 = dma.done [#allocation3], 128
    $region13: #{tpu_custom_call.1} parent=1 // pred_fallthru
      _
    %v23 = vld [vmem:[#allocation2] sm:$0xff]
    %v24 = vld [vmem:[%s1] sm:$0x1]
    %v26 = vlaneseq
    %v27 = vshrl.u32 %v26, 7
    %v28 = vsub.s32 0, %v27
    %v29 = vrot.slane %v24, %v28
    %v31 = vmul.f32 %v23, %v29
    %vm32 = vcmask 162816
    %v33 = vsel %vm32, %v31, 0.0
    %34 = vadd.xlane.f32.xlu0 %v33
    %v35 = vpop.xlane.xlu0 %34
    %v36 = vadd.f32 %v35, %v29
    %38 = vrot.lane.b32.xlu0 %v36, 108
    %v39 = vpop.permute.xlu0 %38
    %vm41 = vcmask 7168
    %42 = vst.msk [vmem:[%s2] sm:$0xff] %vm41, %v39
    // Predicated region
    $region14: #{tpu_custom_call.1} parent=1 // pred_check
      _
    $region15: #{tpu_custom_call.1} parent=1 // pred_check_branch
      %44 = sbr.rel (0) target = $region17
    $region16: #{tpu_custom_call.1} parent=1 // pred_region
      _
    $region17: #{tpu_custom_call.1} parent=1 // pred_fallthru
      _
    // Predicated region
    $region18: #{tpu_custom_call.1} parent=1 // pred_check
      _
    $region19: #{tpu_custom_call.1} parent=1 // pred_check_branch
      %46 = sbr.rel (0) target = $region21
    $region20: #{tpu_custom_call.1} parent=1 // pred_region
      _
    $region21: #{tpu_custom_call.1} parent=1 // pred_fallthru
      _
    %47 = vsyncpa [#allocation3], 1

</llo_original>
